<compile_context>
chip_gen: v6e
topology: v6e:2x2x1
jax: 0.10.0
libtpu: 0.0.40
codegen_flags: <defaults>
</compile_context>

<pallas_src>
import jax
import jax.numpy as jnp
import numpy as np
from jax.experimental import pallas as pl
from jax.experimental.pallas import tpu as pltpu


def _align8(n: int) -> int:
    return (n + 7) & ~7


def char_rnn_forward(input_seq, params, hidden=None):
    """Mirrors CharRNN.forward: returns (y [T, n_chars], hidden [hidden_size])."""
    emb = params["embedding"].astype(jnp.float32)     # [n_chars, E]
    waa_w = params["waa_w"].astype(jnp.float32)       # [H, H]  (torch Linear: out x in)
    wax_w = params["wax_w"].astype(jnp.float32)       # [H, E]
    wax_b = params["wax_b"].astype(jnp.float32)       # [H]
    wya_w = params["wya_w"].astype(jnp.float32)       # [C, H]
    wya_b = params["wya_b"].astype(jnp.float32)       # [C]

    T = int(input_seq.shape[0])
    n_chars, E = int(emb.shape[0]), int(emb.shape[1])
    H = int(waa_w.shape[0])
    C = int(wya_w.shape[0])

    if hidden is None:
        hidden = jnp.zeros((H,), dtype=jnp.float32)
    hidden = hidden.astype(jnp.float32)

    # Lane width of the packed slab (must cover E, H and C).
    LANES = 128 * pl.cdiv(max(E, H, C), 128)

    # --- packed-slab row layout (every section 8-row aligned) --------------
    EMB_OFF = 0                                   # [n_chars, :E]  embedding table
    WAX_OFF = EMB_OFF + _align8(n_chars)          # [LANES,  :H]  Wax^T zero-padded to LANES rows
    BAX_OFF = WAX_OFF + LANES                     # [1,      :H]  b_ax
    WAA_OFF = BAX_OFF + 8                         # [H,      :H]  Waa^T
    WYA_OFF = WAA_OFF + _align8(H)                # [H,      :C]  Wya^T
    BYA_OFF = WYA_OFF + _align8(H)                # [1,      :C]  b_ya
    H0_OFF = BYA_OFF + 8                          # [1,      :H]  initial hidden
    ROWS = H0_OFF + 8

    # One f32 slab -> one input DMA. (For static weights this prep can be
    # hoisted/cached outside the per-step call path.)
    slab = jnp.zeros((ROWS, LANES), jnp.float32)
    slab = slab.at[EMB_OFF:EMB_OFF + n_chars, :E].set(emb)
    slab = slab.at[WAX_OFF:WAX_OFF + E, :H].set(wax_w.T)
    slab = slab.at[BAX_OFF, :H].set(wax_b)
    slab = slab.at[WAA_OFF:WAA_OFF + H, :H].set(waa_w.T)
    slab = slab.at[WYA_OFF:WYA_OFF + H, :C].set(wya_w.T)
    slab = slab.at[BYA_OFF, :C].set(wya_b)
    slab = slab.at[H0_OFF, :H].set(hidden)

    def kernel(ids_ref, slab_ref, y_ref, hout_ref):
        # Hoisted weight loads (a handful of vregs each, used once / loop-invariant).
        wax = slab_ref[WAX_OFF:WAX_OFF + LANES, :H]      # (LANES, H), rows >= E are zero
        bax = slab_ref[BAX_OFF:BAX_OFF + 1, :H]          # (1, H)
        waa = slab_ref[WAA_OFF:WAA_OFF + H, :H]          # (H, H)
        wya = slab_ref[WYA_OFF:WYA_OFF + H, :C]          # (H, C)
        bya = slab_ref[BYA_OFF:BYA_OFF + 1, :C]          # (1, C)
        h = slab_ref[H0_OFF:H0_OFF + 1, :H]              # (1, H) initial hidden

        # Fused embedding gather: ids come from SMEM (scalar prefetch), each row
        # is a dynamic sublane slice of the slab. Rows are full LANES wide; lanes
        # >= E are zero and pair with the zero-padded rows of wax below.
        x = jnp.concatenate(
            [slab_ref[pl.ds(EMB_OFF + ids_ref[t], 1), :] for t in range(T)],
            axis=0,
        )                                                # (T, LANES), vreg-resident

        # Hoisted input projection: one batched MXU op + bias (off the serial chain).
        xp = jnp.dot(x, wax, preferred_element_type=jnp.float32) + bax   # (T, H)
        # Pre-slice rows so the sublane extracts are independent of the recurrence.
        xp_rows = [xp[t:t + 1, :] for t in range(T)]

        # Serial recurrence, fully unrolled (T small & static). h and all
        # post-tanh rows stay in vregs — no VMEM traffic on the critical chain.
        a_rows = []
        for t in range(T):
            h = jnp.tanh(
                jnp.dot(h, waa, preferred_element_type=jnp.float32) + xp_rows[t]
            )
            a_rows.append(h)
        a = jnp.concatenate(a_rows, axis=0)              # (T, H)

        # Deferred output projection + single dense store of the whole y slab.
        y_ref[...] = jnp.dot(a, wya, preferred_element_type=jnp.float32) + bya
        hout_ref[...] = h

    y, h_out = pl.pallas_call(
        kernel,
        out_shape=(
            jax.ShapeDtypeStruct((T, C), jnp.float32),
            jax.ShapeDtypeStruct((1, H), jnp.float32),
        ),
        grid_spec=pltpu.PrefetchScalarGridSpec(
            num_scalar_prefetch=1,          # input_seq -> SMEM
            grid=(1,),
            in_specs=[
                pl.BlockSpec((ROWS, LANES), lambda i, ids: (0, 0)),
            ],
            out_specs=(
                pl.BlockSpec((T, C), lambda i, ids: (0, 0)),
                pl.BlockSpec((1, H), lambda i, ids: (0, 0)),
            ),
        ),
        compiler_params=pltpu.CompilerParams(
            dimension_semantics=("arbitrary",),
        ),
    )(input_seq.astype(jnp.int32), slab)

    return y, h_out.reshape(H)


def init_params(key, n_chars, embedding_size, hidden_size):
    ks = jax.random.split(key, 6)
    scale = 0.1
    return {
        "embedding": scale * jax.random.normal(ks[0], (n_chars, embedding_size), jnp.float32),
        "waa_w": scale * jax.random.normal(ks[1], (hidden_size, hidden_size), jnp.float32),
        "wax_w": scale * jax.random.normal(ks[2], (hidden_size, embedding_size), jnp.float32),
        "wax_b": scale * jax.random.normal(ks[3], (hidden_size,), jnp.float32),
        "wya_w": scale * jax.random.normal(ks[4], (n_chars, hidden_size), jnp.float32),
        "wya_b": scale * jax.random.normal(ks[5], (n_chars,), jnp.float32),
    }


def char_rnn_reference(input_seq, params):
    """Pure-JAX reference matching the PyTorch forward semantics."""
    x = jnp.take(params["embedding"].astype(jnp.float32), input_seq, axis=0)
    H = params["waa_w"].shape[0]
    h = jnp.zeros((H,), jnp.float32)
    ys = []
    for t in range(x.shape[0]):
        a = params["waa_w"] @ h + params["wax_w"] @ x[t] + params["wax_b"]
        a = jnp.tanh(a)
        ys.append(params["wya_w"] @ a + params["wya_b"])
        h = a
    return jnp.stack(ys), h


if __name__ == "__main__":
    n_chars = 64
    embedding_size = 16
    hidden_size = 32
    seq_len = 8

    key = jax.random.PRNGKey(0)
    pkey, skey = jax.random.split(key)
    params = init_params(pkey, n_chars, embedding_size, hidden_size)
    input_seq = jax.random.randint(skey, (seq_len,), 0, n_chars, dtype=jnp.int32)

    y, hidden = char_rnn_forward(input_seq, params)
    y = jax.block_until_ready(y)
    hidden = jax.block_until_ready(hidden)

    y_ref, h_ref = char_rnn_reference(input_seq, params)
    np.testing.assert_allclose(np.asarray(y), np.asarray(y_ref), rtol=1e-5, atol=1e-5)
    np.testing.assert_allclose(np.asarray(hidden), np.asarray(h_ref), rtol=1e-5, atol=1e-5)

    assert y.shape == (seq_len, n_chars) and hidden.shape == (hidden_size,)
    print("KERNEL_OK")
</pallas_src>

<mosaic_0001>
module attributes {stable_mosaic.version = 11 : i64} {
  func.func @kernel(%arg0: i32, %arg1: memref<8xi32, #tpu.memory_space<smem>>, %arg2: memref<280x128xf32, #tpu.memory_space<vmem>>, %arg3: memref<8x64xf32, #tpu.memory_space<vmem>>, %arg4: memref<1x32xf32, #tpu.memory_space<vmem>>) attributes {dimension_semantics = [#tpu.dimension_semantics<arbitrary>], iteration_bounds = array<i64: 1>, scalar_prefetch = 1 : i64, scratch_operands = 0 : i64, tpu.core_type = #tpu.core_type<tc>, window_params = [{pipeline_mode = #tpu.pipeline_mode<synchronous>, transform_indices = @transform_0, window_bounds = array<i64: 280, 128>}, {pipeline_mode = #tpu.pipeline_mode<synchronous>, transform_indices = @transform_1, window_bounds = array<i64: 8, 64>}, {pipeline_mode = #tpu.pipeline_mode<synchronous>, transform_indices = @transform_2, window_bounds = array<i64: 1, 32>}]} {
    %c64 = arith.constant 64 : index
    %c0 = arith.constant 0 : index
    %0 = vector.load %arg2[%c64, %c0] : memref<280x128xf32, #tpu.memory_space<vmem>>, vector<128x32xf32>
    %c192 = arith.constant 192 : index
    %c0_0 = arith.constant 0 : index
    %1 = vector.load %arg2[%c192, %c0_0] : memref<280x128xf32, #tpu.memory_space<vmem>>, vector<1x32xf32>
    %c200 = arith.constant 200 : index
    %c0_1 = arith.constant 0 : index
    %2 = vector.load %arg2[%c200, %c0_1] : memref<280x128xf32, #tpu.memory_space<vmem>>, vector<32x32xf32>
    %c232 = arith.constant 232 : index
    %c0_2 = arith.constant 0 : index
    %3 = vector.load %arg2[%c232, %c0_2] : memref<280x128xf32, #tpu.memory_space<vmem>>, vector<32x64xf32>
    %c264 = arith.constant 264 : index
    %c0_3 = arith.constant 0 : index
    %4 = vector.load %arg2[%c264, %c0_3] : memref<280x128xf32, #tpu.memory_space<vmem>>, vector<1x64xf32>
    %c272 = arith.constant 272 : index
    %c0_4 = arith.constant 0 : index
    %5 = vector.load %arg2[%c272, %c0_4] : memref<280x128xf32, #tpu.memory_space<vmem>>, vector<1x32xf32>
    %c0_5 = arith.constant 0 : index
    %6 = memref.load %arg1[%c0_5] : memref<8xi32, #tpu.memory_space<smem>>
    %c0_i32 = arith.constant 0 : i32
    %7 = arith.addi %c0_i32, %6 : i32
    %8 = arith.index_cast %7 : i32 to index
    %c0_6 = arith.constant 0 : index
    %9 = vector.load %arg2[%8, %c0_6] : memref<280x128xf32, #tpu.memory_space<vmem>>, vector<1x128xf32>
    %c1 = arith.constant 1 : index
    %10 = memref.load %arg1[%c1] : memref<8xi32, #tpu.memory_space<smem>>
    %c0_i32_7 = arith.constant 0 : i32
    %11 = arith.addi %c0_i32_7, %10 : i32
    %12 = arith.index_cast %11 : i32 to index
    %c0_8 = arith.constant 0 : index
    %13 = vector.load %arg2[%12, %c0_8] : memref<280x128xf32, #tpu.memory_space<vmem>>, vector<1x128xf32>
    %c2 = arith.constant 2 : index
    %14 = memref.load %arg1[%c2] : memref<8xi32, #tpu.memory_space<smem>>
    %c0_i32_9 = arith.constant 0 : i32
    %15 = arith.addi %c0_i32_9, %14 : i32
    %16 = arith.index_cast %15 : i32 to index
    %c0_10 = arith.constant 0 : index
    %17 = vector.load %arg2[%16, %c0_10] : memref<280x128xf32, #tpu.memory_space<vmem>>, vector<1x128xf32>
    %c3 = arith.constant 3 : index
    %18 = memref.load %arg1[%c3] : memref<8xi32, #tpu.memory_space<smem>>
    %c0_i32_11 = arith.constant 0 : i32
    %19 = arith.addi %c0_i32_11, %18 : i32
    %20 = arith.index_cast %19 : i32 to index
    %c0_12 = arith.constant 0 : index
    %21 = vector.load %arg2[%20, %c0_12] : memref<280x128xf32, #tpu.memory_space<vmem>>, vector<1x128xf32>
    %c4 = arith.constant 4 : index
    %22 = memref.load %arg1[%c4] : memref<8xi32, #tpu.memory_space<smem>>
    %c0_i32_13 = arith.constant 0 : i32
    %23 = arith.addi %c0_i32_13, %22 : i32
    %24 = arith.index_cast %23 : i32 to index
    %c0_14 = arith.constant 0 : index
    %25 = vector.load %arg2[%24, %c0_14] : memref<280x128xf32, #tpu.memory_space<vmem>>, vector<1x128xf32>
    %c5 = arith.constant 5 : index
    %26 = memref.load %arg1[%c5] : memref<8xi32, #tpu.memory_space<smem>>
    %c0_i32_15 = arith.constant 0 : i32
    %27 = arith.addi %c0_i32_15, %26 : i32
    %28 = arith.index_cast %27 : i32 to index
    %c0_16 = arith.constant 0 : index
    %29 = vector.load %arg2[%28, %c0_16] : memref<280x128xf32, #tpu.memory_space<vmem>>, vector<1x128xf32>
    %c6 = arith.constant 6 : index
    %30 = memref.load %arg1[%c6] : memref<8xi32, #tpu.memory_space<smem>>
    %c0_i32_17 = arith.constant 0 : i32
    %31 = arith.addi %c0_i32_17, %30 : i32
    %32 = arith.index_cast %31 : i32 to index
    %c0_18 = arith.constant 0 : index
    %33 = vector.load %arg2[%32, %c0_18] : memref<280x128xf32, #tpu.memory_space<vmem>>, vector<1x128xf32>
    %c7 = arith.constant 7 : index
    %34 = memref.load %arg1[%c7] : memref<8xi32, #tpu.memory_space<smem>>
    %c0_i32_19 = arith.constant 0 : i32
    %35 = arith.addi %c0_i32_19, %34 : i32
    %36 = arith.index_cast %35 : i32 to index
    %c0_20 = arith.constant 0 : index
    %37 = vector.load %arg2[%36, %c0_20] : memref<280x128xf32, #tpu.memory_space<vmem>>, vector<1x128xf32>
    %38 = tpu.concatenate %9, %13, %17, %21, %25, %29, %33, %37 in 0 : vector<1x128xf32>, vector<1x128xf32>, vector<1x128xf32>, vector<1x128xf32>, vector<1x128xf32>, vector<1x128xf32>, vector<1x128xf32>, vector<1x128xf32> -> vector<8x128xf32>
    %cst = arith.constant dense<0.000000e+00> : vector<8x32xf32>
    %39 = tpu.matmul %38, %0, %cst {dimension_numbers = #tpu.dot_dimension_numbers<[1], [0], [0], [1], [0, 0, 1, 1], [], []>} : vector<8x128xf32>, vector<128x32xf32>, vector<8x32xf32> -> vector<8x32xf32>
    %40 = vector.broadcast %1 : vector<1x32xf32> to vector<8x32xf32>
    %41 = arith.addf %39, %40 : vector<8x32xf32>
    %42 = vector.extract_strided_slice %41 {offsets = [0, 0], sizes = [1, 32], strides = [1, 1]} : vector<8x32xf32> to vector<1x32xf32>
    %43 = vector.extract_strided_slice %41 {offsets = [1, 0], sizes = [1, 32], strides = [1, 1]} : vector<8x32xf32> to vector<1x32xf32>
    %44 = vector.extract_strided_slice %41 {offsets = [2, 0], sizes = [1, 32], strides = [1, 1]} : vector<8x32xf32> to vector<1x32xf32>
    %45 = vector.extract_strided_slice %41 {offsets = [3, 0], sizes = [1, 32], strides = [1, 1]} : vector<8x32xf32> to vector<1x32xf32>
    %46 = vector.extract_strided_slice %41 {offsets = [4, 0], sizes = [1, 32], strides = [1, 1]} : vector<8x32xf32> to vector<1x32xf32>
    %47 = vector.extract_strided_slice %41 {offsets = [5, 0], sizes = [1, 32], strides = [1, 1]} : vector<8x32xf32> to vector<1x32xf32>
    %48 = vector.extract_strided_slice %41 {offsets = [6, 0], sizes = [1, 32], strides = [1, 1]} : vector<8x32xf32> to vector<1x32xf32>
    %49 = vector.extract_strided_slice %41 {offsets = [7, 0], sizes = [1, 32], strides = [1, 1]} : vector<8x32xf32> to vector<1x32xf32>
    %cst_21 = arith.constant dense<0.000000e+00> : vector<1x32xf32>
    %50 = tpu.matmul %5, %2, %cst_21 {dimension_numbers = #tpu.dot_dimension_numbers<[1], [0], [0], [1], [0, 0, 1, 1], [], []>} : vector<1x32xf32>, vector<32x32xf32>, vector<1x32xf32> -> vector<1x32xf32>
    %51 = arith.addf %50, %42 : vector<1x32xf32>
    %52 = math.tanh %51 : vector<1x32xf32>
    %cst_22 = arith.constant dense<0.000000e+00> : vector<1x32xf32>
    %53 = tpu.matmul %52, %2, %cst_22 {dimension_numbers = #tpu.dot_dimension_numbers<[1], [0], [0], [1], [0, 0, 1, 1], [], []>} : vector<1x32xf32>, vector<32x32xf32>, vector<1x32xf32> -> vector<1x32xf32>
    %54 = arith.addf %53, %43 : vector<1x32xf32>
    %55 = math.tanh %54 : vector<1x32xf32>
    %cst_23 = arith.constant dense<0.000000e+00> : vector<1x32xf32>
    %56 = tpu.matmul %55, %2, %cst_23 {dimension_numbers = #tpu.dot_dimension_numbers<[1], [0], [0], [1], [0, 0, 1, 1], [], []>} : vector<1x32xf32>, vector<32x32xf32>, vector<1x32xf32> -> vector<1x32xf32>
    %57 = arith.addf %56, %44 : vector<1x32xf32>
    %58 = math.tanh %57 : vector<1x32xf32>
    %cst_24 = arith.constant dense<0.000000e+00> : vector<1x32xf32>
    %59 = tpu.matmul %58, %2, %cst_24 {dimension_numbers = #tpu.dot_dimension_numbers<[1], [0], [0], [1], [0, 0, 1, 1], [], []>} : vector<1x32xf32>, vector<32x32xf32>, vector<1x32xf32> -> vector<1x32xf32>
    %60 = arith.addf %59, %45 : vector<1x32xf32>
    %61 = math.tanh %60 : vector<1x32xf32>
    %cst_25 = arith.constant dense<0.000000e+00> : vector<1x32xf32>
    %62 = tpu.matmul %61, %2, %cst_25 {dimension_numbers = #tpu.dot_dimension_numbers<[1], [0], [0], [1], [0, 0, 1, 1], [], []>} : vector<1x32xf32>, vector<32x32xf32>, vector<1x32xf32> -> vector<1x32xf32>
    %63 = arith.addf %62, %46 : vector<1x32xf32>
    %64 = math.tanh %63 : vector<1x32xf32>
    %cst_26 = arith.constant dense<0.000000e+00> : vector<1x32xf32>
    %65 = tpu.matmul %64, %2, %cst_26 {dimension_numbers = #tpu.dot_dimension_numbers<[1], [0], [0], [1], [0, 0, 1, 1], [], []>} : vector<1x32xf32>, vector<32x32xf32>, vector<1x32xf32> -> vector<1x32xf32>
    %66 = arith.addf %65, %47 : vector<1x32xf32>
    %67 = math.tanh %66 : vector<1x32xf32>
    %cst_27 = arith.constant dense<0.000000e+00> : vector<1x32xf32>
    %68 = tpu.matmul %67, %2, %cst_27 {dimension_numbers = #tpu.dot_dimension_numbers<[1], [0], [0], [1], [0, 0, 1, 1], [], []>} : vector<1x32xf32>, vector<32x32xf32>, vector<1x32xf32> -> vector<1x32xf32>
    %69 = arith.addf %68, %48 : vector<1x32xf32>
    %70 = math.tanh %69 : vector<1x32xf32>
    %cst_28 = arith.constant dense<0.000000e+00> : vector<1x32xf32>
    %71 = tpu.matmul %70, %2, %cst_28 {dimension_numbers = #tpu.dot_dimension_numbers<[1], [0], [0], [1], [0, 0, 1, 1], [], []>} : vector<1x32xf32>, vector<32x32xf32>, vector<1x32xf32> -> vector<1x32xf32>
    %72 = arith.addf %71, %49 : vector<1x32xf32>
    %73 = math.tanh %72 : vector<1x32xf32>
    %74 = tpu.concatenate %52, %55, %58, %61, %64, %67, %70, %73 in 0 : vector<1x32xf32>, vector<1x32xf32>, vector<1x32xf32>, vector<1x32xf32>, vector<1x32xf32>, vector<1x32xf32>, vector<1x32xf32>, vector<1x32xf32> -> vector<8x32xf32>
    %cst_29 = arith.constant dense<0.000000e+00> : vector<8x64xf32>
    %75 = tpu.matmul %74, %3, %cst_29 {dimension_numbers = #tpu.dot_dimension_numbers<[1], [0], [0], [1], [0, 0, 1, 1], [], []>} : vector<8x32xf32>, vector<32x64xf32>, vector<8x64xf32> -> vector<8x64xf32>
    %76 = vector.broadcast %4 : vector<1x64xf32> to vector<8x64xf32>
    %77 = arith.addf %75, %76 : vector<8x64xf32>
    %c0_30 = arith.constant 0 : index
    %c0_31 = arith.constant 0 : index
    %78 = vector.load %arg3[%c0_30, %c0_31] : memref<8x64xf32, #tpu.memory_space<vmem>>, vector<8x64xf32>
    tpu.vector_store %arg3[%c0_30, %c0_31], %77 {strides = array<i32>} : memref<8x64xf32, #tpu.memory_space<vmem>>, vector<8x64xf32>,
    %c0_32 = arith.constant 0 : index
    %c0_33 = arith.constant 0 : index
    %79 = vector.load %arg4[%c0_32, %c0_33] : memref<1x32xf32, #tpu.memory_space<vmem>>, vector<1x32xf32>
    tpu.vector_store %arg4[%c0_32, %c0_33], %73 {strides = array<i32>} : memref<1x32xf32, #tpu.memory_space<vmem>>, vector<1x32xf32>,
    return
  }
  func.func @transform_0(%arg0: i32, %arg1: memref<8xi32, #tpu.memory_space<smem>>) -> (i32, i32) {
    %c0_i32 = arith.constant 0 : i32
    %c0_i32_0 = arith.constant 0 : i32
    %c0_i32_1 = arith.constant 0 : i32
    return %c0_i32, %c0_i32_0 : i32, i32
  }
  func.func @transform_1(%arg0: i32, %arg1: memref<8xi32, #tpu.memory_space<smem>>) -> (i32, i32) {
    %c0_i32 = arith.constant 0 : i32
    %c0_i32_0 = arith.constant 0 : i32
    %c0_i32_1 = arith.constant 0 : i32
    return %c0_i32, %c0_i32_0 : i32, i32
  }
  func.func @transform_2(%arg0: i32, %arg1: memref<8xi32, #tpu.memory_space<smem>>) -> (i32, i32) {
    %c0_i32 = arith.constant 0 : i32
    %c0_i32_0 = arith.constant 0 : i32
    %c0_i32_1 = arith.constant 0 : i32
    return %c0_i32, %c0_i32_0 : i32, i32
  }
}

</mosaic_0001>

<llo_original>
// kernel: tpu_custom_call.1
$region0: #{tpu_custom_call.1}
  #allocation0 [shape = 'u32[]', space=smem, size = 0x4, offset = 0x4, fixed_abs, tag = 'smem constant byte address 0x4 - core index']
  #allocation1 [shape = 'u32[144,128]{1,0:T(1,128)}', space=vmem, size = 0x12000, scoped, tag = 'internal scratch']
  #allocation2 [shape = 's32[1]{0}', space=sflag, size = 0x4, scoped, tag = 'scoped memory for tpu_custom_call.1']
  #allocation3 [shape = 'u8[512]{0}', space=smem, size = 0x200, scoped, tag = 'prefetched SMEM operand 0']
  %s0 = inlined_call_operand.hbm [shape: s32[8], index: 0, kind: input, shape index: {}]
  %s1 = inlined_call_operand.hbm [shape: f32[280,128], index: 1, kind: input, shape index: {}]
  %s2 = inlined_call_operand.hbm [shape: f32[8,64], index: 2, kind: output, shape index: {0}]
  %s3 = inlined_call_operand.hbm [shape: f32[1,32], index: 3, kind: output, shape index: {1}]
  %4 = xla_tuple %s2, %s3
  %s5 = sld [smem:[#allocation0]]
  $region26: #{tpu_custom_call.1} parent=0
    _
  %s7 = ssub.s32 1, %s5
  %s8 = scalar_select 0, %s7, %s5
  %10 = dma.hbm_to_smem %s0, 16, [#allocation3], [#allocation2]
  %11 = dma.done [#allocation2], 16
  %12 = sfence
  $region1: #{tpu_custom_call.1} parent=0
    #allocation4 [shape = 'u8[143360]{0}', space=vmem, size = 0x23000, scoped, tag = 'input window, operand 1, single buffered']
    #allocation5 [shape = 's32[1]{0}', space=sflag, size = 0x4, scoped, tag = 'scoped memory for tpu_custom_call.1']
    #allocation6 [shape = 's32[1]{0}', space=sflag, size = 0x4, scoped, tag = 'scoped memory for tpu_custom_call.1']
    #allocation7 [shape = 'u8[4096]{0}', space=vmem, size = 0x1000, scoped, tag = 'output window, operand 0, single buffered']
    #allocation8 [shape = 'u8[512]{0}', space=vmem, size = 0x400, scoped, tag = 'output window, operand 1, single buffered']
    #allocation9 [shape = 's32[1]{0}', space=sflag, size = 0x4, scoped, tag = 'scoped memory for tpu_custom_call.1']
    %13 = vsyncpa [#allocation5], 0
    %14 = vsyncpa [#allocation6], 0
    %15 = vsyncpa [#allocation9], 0
    // Predicated region
    $region2: #{tpu_custom_call.1} parent=1 // pred_check
      _
    $region3: #{tpu_custom_call.1} parent=1 // pred_check_branch
      %17 = sbr.rel (0) target = $region5
    $region4: #{tpu_custom_call.1} parent=1 // pred_region
      %s19 = ssub.s32 4480, 4480
      %20 = vsyncadd [#allocation5], %s19
      %s21 = sshll.u32 [#allocation4], 4
      %s22 = int_to_ptr.vmem [resolvable:$true] %s21
      %27 = dma.hbm_to_vmem [thread:$0]  %s1, 4480, %s22, [#allocation5], 128, 128, 8
    $region5: #{tpu_custom_call.1} parent=1 // pred_fallthru
      _
    // Predicated region
    $region6: #{tpu_custom_call.1} parent=1 // pred_check
      _
    $region7: #{tpu_custom_call.1} parent=1 // pred_check_branch
      %29 = sbr.rel (0) target = $region9
    $region8: #{tpu_custom_call.1} parent=1 // pred_region
      %30 = dma.done [#allocation5], 4480
    $region9: #{tpu_custom_call.1} parent=1 // pred_fallthru
      _
    %v31 = vld [vmem:[#allocation4 + $0x40] sm:$0xff]
    %v32 = vld [vmem:[#allocation4 + $0x48] sm:$0xff]
    %v33 = vld [vmem:[#allocation4 + $0x50] sm:$0xff]
    %v34 = vld [vmem:[#allocation4 + $0x58] sm:$0xff]
    %v35 = vld [vmem:[#allocation4 + $0x60] sm:$0xff]
    %v36 = vld [vmem:[#allocation4 + $0x68] sm:$0xff]
    %v37 = vld [vmem:[#allocation4 + $0x70] sm:$0xff]
    %v38 = vld [vmem:[#allocation4 + $0x78] sm:$0xff]
    %v39 = vld [vmem:[#allocation4 + $0x80] sm:$0xff]
    %v40 = vld [vmem:[#allocation4 + $0x88] sm:$0xff]
    %v41 = vld [vmem:[#allocation4 + $0x90] sm:$0xff]
    %v42 = vld [vmem:[#allocation4 + $0x98] sm:$0xff]
    %v43 = vld [vmem:[#allocation4 + $0xa0] sm:$0xff]
    %v44 = vld [vmem:[#allocation4 + $0xa8] sm:$0xff]
    %v45 = vld [vmem:[#allocation4 + $0xb0] sm:$0xff]
    %v46 = vld [vmem:[#allocation4 + $0xb8] sm:$0xff]
    %v47 = vld [vmem:[#allocation4 + $0xc0] sm:$0x1]
    %v48 = vld [vmem:[#allocation4 + $0xc8] sm:$0xff]
    %v49 = vld [vmem:[#allocation4 + $0xd0] sm:$0xff]
    %v50 = vld [vmem:[#allocation4 + $0xd8] sm:$0xff]
    %v51 = vld [vmem:[#allocation4 + $0xe0] sm:$0xff]
    %v52 = vld [vmem:[#allocation4 + $0xe8] sm:$0xff]
    %v53 = vld [vmem:[#allocation4 + $0xf0] sm:$0xff]
    %v54 = vld [vmem:[#allocation4 + $0xf8] sm:$0xff]
    %v55 = vld [vmem:[#allocation4 + $0x100] sm:$0xff]
    %v56 = vld [vmem:[#allocation4 + $0x108] sm:$0x1]
    %v57 = vld [vmem:[#allocation4 + $0x110] sm:$0x1]
    %s58 = sld [smem:[#allocation3]]
    %s59 = scalar_lea.vmem [#allocation4], %s58
    %v60 = vld [vmem:[%s59] sm:$0x1]
    %s61 = sld [smem:[#allocation3 + $0x1]]
    %s62 = scalar_lea.vmem [#allocation4], %s61
    %v63 = vld [vmem:[%s62] sm:$0x1]
    %s64 = sld [smem:[#allocation3 + $0x2]]
    %s65 = scalar_lea.vmem [#allocation4], %s64
    %v66 = vld [vmem:[%s65] sm:$0x1]
    %s67 = sld [smem:[#allocation3 + $0x3]]
    %s68 = scalar_lea.vmem [#allocation4], %s67
    %v69 = vld [vmem:[%s68] sm:$0x1]
    %s70 = sld [smem:[#allocation3 + $0x4]]
    %s71 = scalar_lea.vmem [#allocation4], %s70
    %v72 = vld [vmem:[%s71] sm:$0x1]
    %s73 = sld [smem:[#allocation3 + $0x5]]
    %s74 = scalar_lea.vmem [#allocation4], %s73
    %v75 = vld [vmem:[%s74] sm:$0x1]
    %s76 = sld [smem:[#allocation3 + $0x6]]
    %s77 = scalar_lea.vmem [#allocation4], %s76
    %v78 = vld [vmem:[%s77] sm:$0x1]
    %s79 = sld [smem:[#allocation3 + $0x7]]
    %s80 = scalar_lea.vmem [#allocation4], %s79
    %v81 = vld [vmem:[%s80] sm:$0x1]
    %v83 = vrot.slane %v63, 7
    %v86 = vrot.slane %v66, 6
    %v89 = vrot.slane %v69, 5
    %v92 = vrot.slane %v72, 4
    %v95 = vrot.slane %v75, 3
    %v98 = vrot.slane %v78, 2
    %v101 = vrot.slane %v81, 1
    %vm103 = vcmask 1040384
    %v104 = vsel %vm103, %v60, %v83
    %vm105 = vcmask 1041408
    %v106 = vsel %vm105, %v104, %v86
    %vm107 = vcmask 1042432
    %v108 = vsel %vm107, %v106, %v89
    %vm109 = vcmask 1043456
    %v110 = vsel %vm109, %v108, %v92
    %vm111 = vcmask 1044480
    %v112 = vsel %vm111, %v110, %v95
    %vm113 = vcmask 1045504
    %v114 = vsel %vm113, %v112, %v98
    %vm115 = vcmask 1046528
    %v116 = vsel %vm115, %v114, %v101
    %v117 = vlaneseq
    %v118 = vshrl.u32 %v117, 7
    %v119 = vsub.s32 0, %v118
    %v120 = vrot.slane %v47, %v119
    %121 = vmatprep.subr.mxu0 0.0
    %122 = vmatpush1.msra.mxu0 %v46
    %123 = vmatprep.subr.mxu0 0.0
    %124 = vmatpush1.msra.mxu0 %v45
    %125 = vmatprep.subr.mxu0 0.0
    %126 = vmatpush1.msra.mxu0 %v44
    %127 = vmatprep.subr.mxu0 0.0
    %128 = vmatpush1.msra.mxu0 %v43
    %129 = vmatprep.subr.mxu0 0.0
    %130 = vmatpush1.msra.mxu0 %v42
    %131 = vmatprep.subr.mxu0 0.0
    %132 = vmatpush1.msra.mxu0 %v41
    %133 = vmatprep.subr.mxu0 0.0
    %134 = vmatpush1.msra.mxu0 %v40
    %135 = vmatprep.subr.mxu0 0.0
    %136 = vmatpush1.msra.mxu0 %v39
    %137 = vmatprep.subr.mxu0 0.0
    %138 = vmatpush1.msra.mxu0 %v38
    %139 = vmatprep.subr.mxu0 0.0
    %140 = vmatpush1.msra.mxu0 %v37
    %141 = vmatprep.subr.mxu0 0.0
    %142 = vmatpush1.msra.mxu0 %v36
    %143 = vmatprep.subr.mxu0 0.0
    %144 = vmatpush1.msra.mxu0 %v35
    %145 = vmatprep.subr.mxu0 0.0
    %146 = vmatpush1.msra.mxu0 %v34
    %147 = vmatprep.subr.mxu0 0.0
    %148 = vmatpush1.msra.mxu0 %v33
    %149 = vmatprep.subr.mxu0 0.0
    %150 = vmatpush1.msra.mxu0 %v32
    %151 = vmatprep.subr.mxu0 0.0
    %152 = vmatpush1.msra.mxu0 %v31
    %153 = vmatprep.subr.mxu0 0.0
    %154 = vmatpush2.msra.mxu0 0.0
    %155 = vmatprep.subr.mxu0 0.0
    %156 = vmatpush2.msra.mxu0 0.0
    %157 = vmatprep.subr.mxu0 0.0
    %158 = vmatpush2.msra.mxu0 0.0
    %159 = vmatprep.subr.mxu0 0.0
    %160 = vmatpush2.msra.mxu0 0.0
    %161 = vmatprep.subr.mxu0 0.0
    %162 = vmatpush2.msra.mxu0 0.0
    %163 = vmatprep.subr.mxu0 0.0
    %164 = vmatpush2.msra.mxu0 0.0
    %165 = vmatprep.subr.mxu0 0.0
    %166 = vmatpush2.msra.mxu0 0.0
    %167 = vmatprep.subr.mxu0 0.0
    %168 = vmatpush2.msra.mxu0 0.0
    %169 = vmatprep.subr.mxu0 0.0
    %170 = vmatpush2.msra.mxu0 0.0
    %171 = vmatprep.subr.mxu0 0.0
    %172 = vmatpush2.msra.mxu0 0.0
    %173 = vmatprep.subr.mxu0 0.0
    %174 = vmatpush2.msra.mxu0 0.0
    %175 = vmatprep.subr.mxu0 0.0
    %176 = vmatpush2.msra.mxu0 0.0
    %177 = vmatprep.subr.mxu0 0.0
    %178 = vmatpush2.msra.mxu0 0.0
    %179 = vmatprep.subr.mxu0 0.0
    %180 = vmatpush2.msra.mxu0 0.0
    %181 = vmatprep.subr.mxu0 0.0
    %182 = vmatpush2.msra.mxu0 0.0
    %183 = vmatprep.subr.mxu0 0.0
    %184 = vmatpush2.msra.mxu0 0.0
    %185 = vmatprep.mubr.f32.mxu0 0.0
    %186 = vmatmul.mubr.f32.gmra.mxu0 %v116
    %v187 = vpop.f32.mrf.mxu0
    %v188 = vadd.f32 %v120, %v187
    %v189 = vpop.f32.mrf.mxu0
    %190 = vdwg.mxu0
    %vm191 = vcmask 261120
    %v193 = vsel %vm191, %v57, 0
    %195 = vmatprep.subr.mxu0 0.0
    %196 = vmatpush1.msra.mxu0 0.0
    %197 = vmatprep.subr.mxu0 0.0
    %198 = vmatpush1.msra.mxu0 0.0
    %199 = vmatprep.subr.mxu0 0.0
    %200 = vmatpush1.msra.mxu0 0.0
    %201 = vmatprep.subr.mxu0 0.0
    %202 = vmatpush1.msra.mxu0 0.0
    %203 = vmatprep.subr.mxu0 0.0
    %204 = vmatpush1.msra.mxu0 0.0
    %205 = vmatprep.subr.mxu0 0.0
    %206 = vmatpush1.msra.mxu0 0.0
    %207 = vmatprep.subr.mxu0 0.0
    %208 = vmatpush1.msra.mxu0 0.0
    %209 = vmatprep.subr.mxu0 0.0
    %210 = vmatpush1.msra.mxu0 0.0
    %211 = vmatprep.subr.mxu0 0.0
    %212 = vmatpush1.msra.mxu0 0.0
    %213 = vmatprep.subr.mxu0 0.0
    %214 = vmatpush1.msra.mxu0 0.0
    %215 = vmatprep.subr.mxu0 0.0
    %216 = vmatpush1.msra.mxu0 0.0
    %217 = vmatprep.subr.mxu0 0.0
    %218 = vmatpush1.msra.mxu0 0.0
    %219 = vmatprep.subr.mxu0 0.0
    %220 = vmatpush1.msra.mxu0 %v51
    %221 = vmatprep.subr.mxu0 0.0
    %222 = vmatpush1.msra.mxu0 %v50
    %223 = vmatprep.subr.mxu0 0.0
    %224 = vmatpush1.msra.mxu0 %v49
    %225 = vmatprep.subr.mxu0 0.0
    %226 = vmatpush1.msra.mxu0 %v48
    %227 = vmatprep.subr.mxu0 0.0
    %228 = vmatpush2.msra.mxu0 0.0
    %229 = vmatprep.subr.mxu0 0.0
    %230 = vmatpush2.msra.mxu0 0.0
    %231 = vmatprep.subr.mxu0 0.0
    %232 = vmatpush2.msra.mxu0 0.0
    %233 = vmatprep.subr.mxu0 0.0
    %234 = vmatpush2.msra.mxu0 0.0
    %235 = vmatprep.subr.mxu0 0.0
    %236 = vmatpush2.msra.mxu0 0.0
    %237 = vmatprep.subr.mxu0 0.0
    %238 = vmatpush2.msra.mxu0 0.0
    %239 = vmatprep.subr.mxu0 0.0
    %240 = vmatpush2.msra.mxu0 0.0
    %241 = vmatprep.subr.mxu0 0.0
    %242 = vmatpush2.msra.mxu0 0.0
    %243 = vmatprep.subr.mxu0 0.0
    %244 = vmatpush2.msra.mxu0 0.0
    %245 = vmatprep.subr.mxu0 0.0
    %246 = vmatpush2.msra.mxu0 0.0
    %247 = vmatprep.subr.mxu0 0.0
    %248 = vmatpush2.msra.mxu0 0.0
    %249 = vmatprep.subr.mxu0 0.0
    %250 = vmatpush2.msra.mxu0 0.0
    %251 = vmatprep.subr.mxu0 0.0
    %252 = vmatpush2.msra.mxu0 0.0
    %253 = vmatprep.subr.mxu0 0.0
    %254 = vmatpush2.msra.mxu0 0.0
    %255 = vmatprep.subr.mxu0 0.0
    %256 = vmatpush2.msra.mxu0 0.0
    %257 = vmatprep.subr.mxu0 0.0
    %258 = vmatpush2.msra.mxu0 0.0
    %259 = vmatprep.mubr.f32.mxu0 0.0
    %260 = vmatmul.mubr.f32.gmra.mxu0 %v193
    %v261 = vpop.f32.mrf.mxu0
    %v262 = vadd.f32 %v188, %v261
    %v263 = vpop.f32.mrf.mxu0
    %264 = vdwg.mxu0
    %v265 = vtanh.pop %v262
    %v267 = vrot.slane %v188, 1
    %v270 = vsel %vm191, %v265, 0
    %272 = vmatprep.subr.mxu0 0.0
    %273 = vmatpush1.msra.mxu0 0.0
    %274 = vmatprep.subr.mxu0 0.0
    %275 = vmatpush1.msra.mxu0 0.0
    %276 = vmatprep.subr.mxu0 0.0
    %277 = vmatpush1.msra.mxu0 0.0
    %278 = vmatprep.subr.mxu0 0.0
    %279 = vmatpush1.msra.mxu0 0.0
    %280 = vmatprep.subr.mxu0 0.0
    %281 = vmatpush1.msra.mxu0 0.0
    %282 = vmatprep.subr.mxu0 0.0
    %283 = vmatpush1.msra.mxu0 0.0
    %284 = vmatprep.subr.mxu0 0.0
    %285 = vmatpush1.msra.mxu0 0.0
    %286 = vmatprep.subr.mxu0 0.0
    %287 = vmatpush1.msra.mxu0 0.0
    %288 = vmatprep.subr.mxu0 0.0
    %289 = vmatpush1.msra.mxu0 0.0
    %290 = vmatprep.subr.mxu0 0.0
    %291 = vmatpush1.msra.mxu0 0.0
    %292 = vmatprep.subr.mxu0 0.0
    %293 = vmatpush1.msra.mxu0 0.0
    %294 = vmatprep.subr.mxu0 0.0
    %295 = vmatpush1.msra.mxu0 0.0
    %296 = vmatprep.subr.mxu0 0.0
    %297 = vmatpush1.msra.mxu0 %v51
    %298 = vmatprep.subr.mxu0 0.0
    %299 = vmatpush1.msra.mxu0 %v50
    %300 = vmatprep.subr.mxu0 0.0
    %301 = vmatpush1.msra.mxu0 %v49
    %302 = vmatprep.subr.mxu0 0.0
    %303 = vmatpush1.msra.mxu0 %v48
    %304 = vmatprep.subr.mxu0 0.0
    %305 = vmatpush2.msra.mxu0 0.0
    %306 = vmatprep.subr.mxu0 0.0
    %307 = vmatpush2.msra.mxu0 0.0
    %308 = vmatprep.subr.mxu0 0.0
    %309 = vmatpush2.msra.mxu0 0.0
    %310 = vmatprep.subr.mxu0 0.0
    %311 = vmatpush2.msra.mxu0 0.0
    %312 = vmatprep.subr.mxu0 0.0
    %313 = vmatpush2.msra.mxu0 0.0
    %314 = vmatprep.subr.mxu0 0.0
    %315 = vmatpush2.msra.mxu0 0.0
    %316 = vmatprep.subr.mxu0 0.0
    %317 = vmatpush2.msra.mxu0 0.0
    %318 = vmatprep.subr.mxu0 0.0
    %319 = vmatpush2.msra.mxu0 0.0
    %320 = vmatprep.subr.mxu0 0.0
    %321 = vmatpush2.msra.mxu0 0.0
    %322 = vmatprep.subr.mxu0 0.0
    %323 = vmatpush2.msra.mxu0 0.0
    %324 = vmatprep.subr.mxu0 0.0
    %325 = vmatpush2.msra.mxu0 0.0
    %326 = vmatprep.subr.mxu0 0.0
    %327 = vmatpush2.msra.mxu0 0.0
    %328 = vmatprep.subr.mxu0 0.0
    %329 = vmatpush2.msra.mxu0 0.0
    %330 = vmatprep.subr.mxu0 0.0
    %331 = vmatpush2.msra.mxu0 0.0
    %332 = vmatprep.subr.mxu0 0.0
    %333 = vmatpush2.msra.mxu0 0.0
    %334 = vmatprep.subr.mxu0 0.0
    %335 = vmatpush2.msra.mxu0 0.0
    %336 = vmatprep.mubr.f32.mxu0 0.0
    %337 = vmatmul.mubr.f32.gmra.mxu0 %v270
    %v338 = vpop.f32.mrf.mxu0
    %v339 = vadd.f32 %v267, %v338
    %v340 = vpop.f32.mrf.mxu0
    %341 = vdwg.mxu0
    %v342 = vtanh.pop %v339
    %v343 = vrot.slane %v188, 2
    %v346 = vsel %vm191, %v342, 0
    %348 = vmatprep.subr.mxu0 0.0
    %349 = vmatpush1.msra.mxu0 0.0
    %350 = vmatprep.subr.mxu0 0.0
    %351 = vmatpush1.msra.mxu0 0.0
    %352 = vmatprep.subr.mxu0 0.0
    %353 = vmatpush1.msra.mxu0 0.0
    %354 = vmatprep.subr.mxu0 0.0
    %355 = vmatpush1.msra.mxu0 0.0
    %356 = vmatprep.subr.mxu0 0.0
    %357 = vmatpush1.msra.mxu0 0.0
    %358 = vmatprep.subr.mxu0 0.0
    %359 = vmatpush1.msra.mxu0 0.0
    %360 = vmatprep.subr.mxu0 0.0
    %361 = vmatpush1.msra.mxu0 0.0
    %362 = vmatprep.subr.mxu0 0.0
    %363 = vmatpush1.msra.mxu0 0.0
    %364 = vmatprep.subr.mxu0 0.0
    %365 = vmatpush1.msra.mxu0 0.0
    %366 = vmatprep.subr.mxu0 0.0
    %367 = vmatpush1.msra.mxu0 0.0
    %368 = vmatprep.subr.mxu0 0.0
    %369 = vmatpush1.msra.mxu0 0.0
    %370 = vmatprep.subr.mxu0 0.0
    %371 = vmatpush1.msra.mxu0 0.0
    %372 = vmatprep.subr.mxu0 0.0
    %373 = vmatpush1.msra.mxu0 %v51
    %374 = vmatprep.subr.mxu0 0.0
    %375 = vmatpush1.msra.mxu0 %v50
    %376 = vmatprep.subr.mxu0 0.0
    %377 = vmatpush1.msra.mxu0 %v49
    %378 = vmatprep.subr.mxu0 0.0
    %379 = vmatpush1.msra.mxu0 %v48
    %380 = vmatprep.subr.mxu0 0.0
    %381 = vmatpush2.msra.mxu0 0.0
    %382 = vmatprep.subr.mxu0 0.0
    %383 = vmatpush2.msra.mxu0 0.0
    %384 = vmatprep.subr.mxu0 0.0
    %385 = vmatpush2.msra.mxu0 0.0
    %386 = vmatprep.subr.mxu0 0.0
    %387 = vmatpush2.msra.mxu0 0.0
    %388 = vmatprep.subr.mxu0 0.0
    %389 = vmatpush2.msra.mxu0 0.0
    %390 = vmatprep.subr.mxu0 0.0
    %391 = vmatpush2.msra.mxu0 0.0
    %392 = vmatprep.subr.mxu0 0.0
    %393 = vmatpush2.msra.mxu0 0.0
    %394 = vmatprep.subr.mxu0 0.0
    %395 = vmatpush2.msra.mxu0 0.0
    %396 = vmatprep.subr.mxu0 0.0
    %397 = vmatpush2.msra.mxu0 0.0
    %398 = vmatprep.subr.mxu0 0.0
    %399 = vmatpush2.msra.mxu0 0.0
    %400 = vmatprep.subr.mxu0 0.0
    %401 = vmatpush2.msra.mxu0 0.0
    %402 = vmatprep.subr.mxu0 0.0
    %403 = vmatpush2.msra.mxu0 0.0
    %404 = vmatprep.subr.mxu0 0.0
    %405 = vmatpush2.msra.mxu0 0.0
    %406 = vmatprep.subr.mxu0 0.0
    %407 = vmatpush2.msra.mxu0 0.0
    %408 = vmatprep.subr.mxu0 0.0
    %409 = vmatpush2.msra.mxu0 0.0
    %410 = vmatprep.subr.mxu0 0.0
    %411 = vmatpush2.msra.mxu0 0.0
    %412 = vmatprep.mubr.f32.mxu0 0.0
    %413 = vmatmul.mubr.f32.gmra.mxu0 %v346
    %v414 = vpop.f32.mrf.mxu0
    %v415 = vadd.f32 %v343, %v414
    %v416 = vpop.f32.mrf.mxu0
    %417 = vdwg.mxu0
    %v418 = vtanh.pop %v415
    %v419 = vrot.slane %v188, 3
    %v422 = vsel %vm191, %v418, 0
    %424 = vmatprep.subr.mxu0 0.0
    %425 = vmatpush1.msra.mxu0 0.0
    %426 = vmatprep.subr.mxu0 0.0
    %427 = vmatpush1.msra.mxu0 0.0
    %428 = vmatprep.subr.mxu0 0.0
    %429 = vmatpush1.msra.mxu0 0.0
    %430 = vmatprep.subr.mxu0 0.0
    %431 = vmatpush1.msra.mxu0 0.0
    %432 = vmatprep.subr.mxu0 0.0
    %433 = vmatpush1.msra.mxu0 0.0
    %434 = vmatprep.subr.mxu0 0.0
    %435 = vmatpush1.msra.mxu0 0.0
    %436 = vmatprep.subr.mxu0 0.0
    %437 = vmatpush1.msra.mxu0 0.0
    %438 = vmatprep.subr.mxu0 0.0
    %439 = vmatpush1.msra.mxu0 0.0
    %440 = vmatprep.subr.mxu0 0.0
    %441 = vmatpush1.msra.mxu0 0.0
    %442 = vmatprep.subr.mxu0 0.0
    %443 = vmatpush1.msra.mxu0 0.0
    %444 = vmatprep.subr.mxu0 0.0
    %445 = vmatpush1.msra.mxu0 0.0
    %446 = vmatprep.subr.mxu0 0.0
    %447 = vmatpush1.msra.mxu0 0.0
    %448 = vmatprep.subr.mxu0 0.0
    %449 = vmatpush1.msra.mxu0 %v51
    %450 = vmatprep.subr.mxu0 0.0
    %451 = vmatpush1.msra.mxu0 %v50
    %452 = vmatprep.subr.mxu0 0.0
    %453 = vmatpush1.msra.mxu0 %v49
    %454 = vmatprep.subr.mxu0 0.0
    %455 = vmatpush1.msra.mxu0 %v48
    %456 = vmatprep.subr.mxu0 0.0
    %457 = vmatpush2.msra.mxu0 0.0
    %458 = vmatprep.subr.mxu0 0.0
    %459 = vmatpush2.msra.mxu0 0.0
    %460 = vmatprep.subr.mxu0 0.0
    %461 = vmatpush2.msra.mxu0 0.0
    %462 = vmatprep.subr.mxu0 0.0
    %463 = vmatpush2.msra.mxu0 0.0
    %464 = vmatprep.subr.mxu0 0.0
    %465 = vmatpush2.msra.mxu0 0.0
    %466 = vmatprep.subr.mxu0 0.0
    %467 = vmatpush2.msra.mxu0 0.0
    %468 = vmatprep.subr.mxu0 0.0
    %469 = vmatpush2.msra.mxu0 0.0
    %470 = vmatprep.subr.mxu0 0.0
    %471 = vmatpush2.msra.mxu0 0.0
    %472 = vmatprep.subr.mxu0 0.0
    %473 = vmatpush2.msra.mxu0 0.0
    %474 = vmatprep.subr.mxu0 0.0
    %475 = vmatpush2.msra.mxu0 0.0
    %476 = vmatprep.subr.mxu0 0.0
    %477 = vmatpush2.msra.mxu0 0.0
    %478 = vmatprep.subr.mxu0 0.0
    %479 = vmatpush2.msra.mxu0 0.0
    %480 = vmatprep.subr.mxu0 0.0
    %481 = vmatpush2.msra.mxu0 0.0
    %482 = vmatprep.subr.mxu0 0.0
    %483 = vmatpush2.msra.mxu0 0.0
    %484 = vmatprep.subr.mxu0 0.0
    %485 = vmatpush2.msra.mxu0 0.0
    %486 = vmatprep.subr.mxu0 0.0
    %487 = vmatpush2.msra.mxu0 0.0
    %488 = vmatprep.mubr.f32.mxu0 0.0
    %489 = vmatmul.mubr.f32.gmra.mxu0 %v422
    %v490 = vpop.f32.mrf.mxu0
    %v491 = vadd.f32 %v419, %v490
    %v492 = vpop.f32.mrf.mxu0
    %493 = vdwg.mxu0
    %v494 = vtanh.pop %v491
    %v495 = vrot.slane %v188, 4
    %v498 = vsel %vm191, %v494, 0
    %500 = vmatprep.subr.mxu0 0.0
    %501 = vmatpush1.msra.mxu0 0.0
    %502 = vmatprep.subr.mxu0 0.0
    %503 = vmatpush1.msra.mxu0 0.0
    %504 = vmatprep.subr.mxu0 0.0
    %505 = vmatpush1.msra.mxu0 0.0
    %506 = vmatprep.subr.mxu0 0.0
    %507 = vmatpush1.msra.mxu0 0.0
    %508 = vmatprep.subr.mxu0 0.0
    %509 = vmatpush1.msra.mxu0 0.0
    %510 = vmatprep.subr.mxu0 0.0
    %511 = vmatpush1.msra.mxu0 0.0
    %512 = vmatprep.subr.mxu0 0.0
    %513 = vmatpush1.msra.mxu0 0.0
    %514 = vmatprep.subr.mxu0 0.0
    %515 = vmatpush1.msra.mxu0 0.0
    %516 = vmatprep.subr.mxu0 0.0
    %517 = vmatpush1.msra.mxu0 0.0
    %518 = vmatprep.subr.mxu0 0.0
    %519 = vmatpush1.msra.mxu0 0.0
    %520 = vmatprep.subr.mxu0 0.0
    %521 = vmatpush1.msra.mxu0 0.0
    %522 = vmatprep.subr.mxu0 0.0
    %523 = vmatpush1.msra.mxu0 0.0
    %524 = vmatprep.subr.mxu0 0.0
    %525 = vmatpush1.msra.mxu0 %v51
    %526 = vmatprep.subr.mxu0 0.0
    %527 = vmatpush1.msra.mxu0 %v50
    %528 = vmatprep.subr.mxu0 0.0
    %529 = vmatpush1.msra.mxu0 %v49
    %530 = vmatprep.subr.mxu0 0.0
    %531 = vmatpush1.msra.mxu0 %v48
    %532 = vmatprep.subr.mxu0 0.0
    %533 = vmatpush2.msra.mxu0 0.0
    %534 = vmatprep.subr.mxu0 0.0
    %535 = vmatpush2.msra.mxu0 0.0
    %536 = vmatprep.subr.mxu0 0.0
    %537 = vmatpush2.msra.mxu0 0.0
    %538 = vmatprep.subr.mxu0 0.0
    %539 = vmatpush2.msra.mxu0 0.0
    %540 = vmatprep.subr.mxu0 0.0
    %541 = vmatpush2.msra.mxu0 0.0
    %542 = vmatprep.subr.mxu0 0.0
    %543 = vmatpush2.msra.mxu0 0.0
    %544 = vmatprep.subr.mxu0 0.0
    %545 = vmatpush2.msra.mxu0 0.0
    %546 = vmatprep.subr.mxu0 0.0
    %547 = vmatpush2.msra.mxu0 0.0
    %548 = vmatprep.subr.mxu0 0.0
    %549 = vmatpush2.msra.mxu0 0.0
    %550 = vmatprep.subr.mxu0 0.0
    %551 = vmatpush2.msra.mxu0 0.0
    %552 = vmatprep.subr.mxu0 0.0
    %553 = vmatpush2.msra.mxu0 0.0
    %554 = vmatprep.subr.mxu0 0.0
    %555 = vmatpush2.msra.mxu0 0.0
    %556 = vmatprep.subr.mxu0 0.0
    %557 = vmatpush2.msra.mxu0 0.0
    %558 = vmatprep.subr.mxu0 0.0
    %559 = vmatpush2.msra.mxu0 0.0
    %560 = vmatprep.subr.mxu0 0.0
    %561 = vmatpush2.msra.mxu0 0.0
    %562 = vmatprep.subr.mxu0 0.0
    %563 = vmatpush2.msra.mxu0 0.0
    %564 = vmatprep.mubr.f32.mxu0 0.0
    %565 = vmatmul.mubr.f32.gmra.mxu0 %v498
    %v566 = vpop.f32.mrf.mxu0
    %v567 = vadd.f32 %v495, %v566
    %v568 = vpop.f32.mrf.mxu0
    %569 = vdwg.mxu0
    %v570 = vtanh.pop %v567
    %v571 = vrot.slane %v188, 5
    %v574 = vsel %vm191, %v570, 0
    %576 = vmatprep.subr.mxu0 0.0
    %577 = vmatpush1.msra.mxu0 0.0
    %578 = vmatprep.subr.mxu0 0.0
    %579 = vmatpush1.msra.mxu0 0.0
    %580 = vmatprep.subr.mxu0 0.0
    %581 = vmatpush1.msra.mxu0 0.0
    %582 = vmatprep.subr.mxu0 0.0
    %583 = vmatpush1.msra.mxu0 0.0
    %584 = vmatprep.subr.mxu0 0.0
    %585 = vmatpush1.msra.mxu0 0.0
    %586 = vmatprep.subr.mxu0 0.0
    %587 = vmatpush1.msra.mxu0 0.0
    %588 = vmatprep.subr.mxu0 0.0
    %589 = vmatpush1.msra.mxu0 0.0
    %590 = vmatprep.subr.mxu0 0.0
    %591 = vmatpush1.msra.mxu0 0.0
    %592 = vmatprep.subr.mxu0 0.0
    %593 = vmatpush1.msra.mxu0 0.0
    %594 = vmatprep.subr.mxu0 0.0
    %595 = vmatpush1.msra.mxu0 0.0
    %596 = vmatprep.subr.mxu0 0.0
    %597 = vmatpush1.msra.mxu0 0.0
    %598 = vmatprep.subr.mxu0 0.0
    %599 = vmatpush1.msra.mxu0 0.0
    %600 = vmatprep.subr.mxu0 0.0
    %601 = vmatpush1.msra.mxu0 %v51
    %602 = vmatprep.subr.mxu0 0.0
    %603 = vmatpush1.msra.mxu0 %v50
    %604 = vmatprep.subr.mxu0 0.0
    %605 = vmatpush1.msra.mxu0 %v49
    %606 = vmatprep.subr.mxu0 0.0
    %607 = vmatpush1.msra.mxu0 %v48
    %608 = vmatprep.subr.mxu0 0.0
    %609 = vmatpush2.msra.mxu0 0.0
    %610 = vmatprep.subr.mxu0 0.0
    %611 = vmatpush2.msra.mxu0 0.0
    %612 = vmatprep.subr.mxu0 0.0
    %613 = vmatpush2.msra.mxu0 0.0
    %614 = vmatprep.subr.mxu0 0.0
    %615 = vmatpush2.msra.mxu0 0.0
    %616 = vmatprep.subr.mxu0 0.0
    %617 = vmatpush2.msra.mxu0 0.0
    %618 = vmatprep.subr.mxu0 0.0
    %619 = vmatpush2.msra.mxu0 0.0
    %620 = vmatprep.subr.mxu0 0.0
    %621 = vmatpush2.msra.mxu0 0.0
    %622 = vmatprep.subr.mxu0 0.0
    %623 = vmatpush2.msra.mxu0 0.0
    %624 = vmatprep.subr.mxu0 0.0
    %625 = vmatpush2.msra.mxu0 0.0
    %626 = vmatprep.subr.mxu0 0.0
    %627 = vmatpush2.msra.mxu0 0.0
    %628 = vmatprep.subr.mxu0 0.0
    %629 = vmatpush2.msra.mxu0 0.0
    %630 = vmatprep.subr.mxu0 0.0
    %631 = vmatpush2.msra.mxu0 0.0
    %632 = vmatprep.subr.mxu0 0.0
    %633 = vmatpush2.msra.mxu0 0.0
    %634 = vmatprep.subr.mxu0 0.0
    %635 = vmatpush2.msra.mxu0 0.0
    %636 = vmatprep.subr.mxu0 0.0
    %637 = vmatpush2.msra.mxu0 0.0
    %638 = vmatprep.subr.mxu0 0.0
    %639 = vmatpush2.msra.mxu0 0.0
    %640 = vmatprep.mubr.f32.mxu0 0.0
    %641 = vmatmul.mubr.f32.gmra.mxu0 %v574
    %v642 = vpop.f32.mrf.mxu0
    %v643 = vadd.f32 %v571, %v642
    %v644 = vpop.f32.mrf.mxu0
    %645 = vdwg.mxu0
    %v646 = vtanh.pop %v643
    %v647 = vrot.slane %v188, 6
    %v650 = vsel %vm191, %v646, 0
    %652 = vmatprep.subr.mxu0 0.0
    %653 = vmatpush1.msra.mxu0 0.0
    %654 = vmatprep.subr.mxu0 0.0
    %655 = vmatpush1.msra.mxu0 0.0
    %656 = vmatprep.subr.mxu0 0.0
    %657 = vmatpush1.msra.mxu0 0.0
    %658 = vmatprep.subr.mxu0 0.0
    %659 = vmatpush1.msra.mxu0 0.0
    %660 = vmatprep.subr.mxu0 0.0
    %661 = vmatpush1.msra.mxu0 0.0
    %662 = vmatprep.subr.mxu0 0.0
    %663 = vmatpush1.msra.mxu0 0.0
    %664 = vmatprep.subr.mxu0 0.0
    %665 = vmatpush1.msra.mxu0 0.0
    %666 = vmatprep.subr.mxu0 0.0
    %667 = vmatpush1.msra.mxu0 0.0
    %668 = vmatprep.subr.mxu0 0.0
    %669 = vmatpush1.msra.mxu0 0.0
    %670 = vmatprep.subr.mxu0 0.0
    %671 = vmatpush1.msra.mxu0 0.0
    %672 = vmatprep.subr.mxu0 0.0
    %673 = vmatpush1.msra.mxu0 0.0
    %674 = vmatprep.subr.mxu0 0.0
    %675 = vmatpush1.msra.mxu0 0.0
    %676 = vmatprep.subr.mxu0 0.0
    %677 = vmatpush1.msra.mxu0 %v51
    %678 = vmatprep.subr.mxu0 0.0
    %679 = vmatpush1.msra.mxu0 %v50
    %680 = vmatprep.subr.mxu0 0.0
    %681 = vmatpush1.msra.mxu0 %v49
    %682 = vmatprep.subr.mxu0 0.0
    %683 = vmatpush1.msra.mxu0 %v48
    %684 = vmatprep.subr.mxu0 0.0
    %685 = vmatpush2.msra.mxu0 0.0
    %686 = vmatprep.subr.mxu0 0.0
    %687 = vmatpush2.msra.mxu0 0.0
    %688 = vmatprep.subr.mxu0 0.0
    %689 = vmatpush2.msra.mxu0 0.0
    %690 = vmatprep.subr.mxu0 0.0
    %691 = vmatpush2.msra.mxu0 0.0
    %692 = vmatprep.subr.mxu0 0.0
    %693 = vmatpush2.msra.mxu0 0.0
    %694 = vmatprep.subr.mxu0 0.0
    %695 = vmatpush2.msra.mxu0 0.0
    %696 = vmatprep.subr.mxu0 0.0
    %697 = vmatpush2.msra.mxu0 0.0
    %698 = vmatprep.subr.mxu0 0.0
    %699 = vmatpush2.msra.mxu0 0.0
    %700 = vmatprep.subr.mxu0 0.0
    %701 = vmatpush2.msra.mxu0 0.0
    %702 = vmatprep.subr.mxu0 0.0
    %703 = vmatpush2.msra.mxu0 0.0
    %704 = vmatprep.subr.mxu0 0.0
    %705 = vmatpush2.msra.mxu0 0.0
    %706 = vmatprep.subr.mxu0 0.0
    %707 = vmatpush2.msra.mxu0 0.0
    %708 = vmatprep.subr.mxu0 0.0
    %709 = vmatpush2.msra.mxu0 0.0
    %710 = vmatprep.subr.mxu0 0.0
    %711 = vmatpush2.msra.mxu0 0.0
    %712 = vmatprep.subr.mxu0 0.0
    %713 = vmatpush2.msra.mxu0 0.0
    %714 = vmatprep.subr.mxu0 0.0
    %715 = vmatpush2.msra.mxu0 0.0
    %716 = vmatprep.mubr.f32.mxu0 0.0
    %717 = vmatmul.mubr.f32.gmra.mxu0 %v650
    %v718 = vpop.f32.mrf.mxu0
    %v719 = vadd.f32 %v647, %v718
    %v720 = vpop.f32.mrf.mxu0
    %721 = vdwg.mxu0
    %v722 = vtanh.pop %v719
    %v723 = vrot.slane %v188, 7
    %v726 = vsel %vm191, %v722, 0
    %728 = vmatprep.subr.mxu0 0.0
    %729 = vmatpush1.msra.mxu0 0.0
    %730 = vmatprep.subr.mxu0 0.0
    %731 = vmatpush1.msra.mxu0 0.0
    %732 = vmatprep.subr.mxu0 0.0
    %733 = vmatpush1.msra.mxu0 0.0
    %734 = vmatprep.subr.mxu0 0.0
    %735 = vmatpush1.msra.mxu0 0.0
    %736 = vmatprep.subr.mxu0 0.0
    %737 = vmatpush1.msra.mxu0 0.0
    %738 = vmatprep.subr.mxu0 0.0
    %739 = vmatpush1.msra.mxu0 0.0
    %740 = vmatprep.subr.mxu0 0.0
    %741 = vmatpush1.msra.mxu0 0.0
    %742 = vmatprep.subr.mxu0 0.0
    %743 = vmatpush1.msra.mxu0 0.0
    %744 = vmatprep.subr.mxu0 0.0
    %745 = vmatpush1.msra.mxu0 0.0
    %746 = vmatprep.subr.mxu0 0.0
    %747 = vmatpush1.msra.mxu0 0.0
    %748 = vmatprep.subr.mxu0 0.0
    %749 = vmatpush1.msra.mxu0 0.0
    %750 = vmatprep.subr.mxu0 0.0
    %751 = vmatpush1.msra.mxu0 0.0
    %752 = vmatprep.subr.mxu0 0.0
    %753 = vmatpush1.msra.mxu0 %v51
    %754 = vmatprep.subr.mxu0 0.0
    %755 = vmatpush1.msra.mxu0 %v50
    %756 = vmatprep.subr.mxu0 0.0
    %757 = vmatpush1.msra.mxu0 %v49
    %758 = vmatprep.subr.mxu0 0.0
    %759 = vmatpush1.msra.mxu0 %v48
    %760 = vmatprep.subr.mxu0 0.0
    %761 = vmatpush2.msra.mxu0 0.0
    %762 = vmatprep.subr.mxu0 0.0
    %763 = vmatpush2.msra.mxu0 0.0
    %764 = vmatprep.subr.mxu0 0.0
    %765 = vmatpush2.msra.mxu0 0.0
    %766 = vmatprep.subr.mxu0 0.0
    %767 = vmatpush2.msra.mxu0 0.0
    %768 = vmatprep.subr.mxu0 0.0
    %769 = vmatpush2.msra.mxu0 0.0
    %770 = vmatprep.subr.mxu0 0.0
    %771 = vmatpush2.msra.mxu0 0.0
    %772 = vmatprep.subr.mxu0 0.0
    %773 = vmatpush2.msra.mxu0 0.0
    %774 = vmatprep.subr.mxu0 0.0
    %775 = vmatpush2.msra.mxu0 0.0
    %776 = vmatprep.subr.mxu0 0.0
    %777 = vmatpush2.msra.mxu0 0.0
    %778 = vmatprep.subr.mxu0 0.0
    %779 = vmatpush2.msra.mxu0 0.0
    %780 = vmatprep.subr.mxu0 0.0
    %781 = vmatpush2.msra.mxu0 0.0
    %782 = vmatprep.subr.mxu0 0.0
    %783 = vmatpush2.msra.mxu0 0.0
    %784 = vmatprep.subr.mxu0 0.0
    %785 = vmatpush2.msra.mxu0 0.0
    %786 = vmatprep.subr.mxu0 0.0
    %787 = vmatpush2.msra.mxu0 0.0
    %788 = vmatprep.subr.mxu0 0.0
    %789 = vmatpush2.msra.mxu0 0.0
    %790 = vmatprep.subr.mxu0 0.0
    %791 = vmatpush2.msra.mxu0 0.0
    %792 = vmatprep.mubr.f32.mxu0 0.0
    %793 = vmatmul.mubr.f32.gmra.mxu0 %v726
    %v794 = vpop.f32.mrf.mxu0
    %v795 = vadd.f32 %v723, %v794
    %v796 = vpop.f32.mrf.mxu0
    %797 = vdwg.mxu0
    %v798 = vtanh.pop %v795
    %v799 = vrot.slane %v342, 7
    %v801 = vrot.slane %v418, 6
    %v803 = vrot.slane %v494, 5
    %v805 = vrot.slane %v570, 4
    %v807 = vrot.slane %v646, 3
    %v809 = vrot.slane %v722, 2
    %v812 = vrot.slane %v798, 1
    %v814 = vsel %vm103, %v265, %v799
    %v815 = vsel %vm105, %v814, %v801
    %v816 = vsel %vm107, %v815, %v803
    %v817 = vsel %vm109, %v816, %v805
    %v818 = vsel %vm111, %v817, %v807
    %v819 = vsel %vm113, %v818, %v809
    %v820 = vsel %vm115, %v819, %v812
    %v821 = vlaneseq
    %v822 = vshrl.u32 %v821, 7
    %v823 = vsub.s32 0, %v822
    %v824 = vrot.slane %v56, %v823
    %v826 = vsel %vm191, %v820, 0
    %828 = vmatprep.subr.mxu0 0.0
    %829 = vmatpush1.msra.mxu0 0.0
    %830 = vmatprep.subr.mxu0 0.0
    %831 = vmatpush1.msra.mxu0 0.0
    %832 = vmatprep.subr.mxu0 0.0
    %833 = vmatpush1.msra.mxu0 0.0
    %834 = vmatprep.subr.mxu0 0.0
    %835 = vmatpush1.msra.mxu0 0.0
    %836 = vmatprep.subr.mxu0 0.0
    %837 = vmatpush1.msra.mxu0 0.0
    %838 = vmatprep.subr.mxu0 0.0
    %839 = vmatpush1.msra.mxu0 0.0
    %840 = vmatprep.subr.mxu0 0.0
    %841 = vmatpush1.msra.mxu0 0.0
    %842 = vmatprep.subr.mxu0 0.0
    %843 = vmatpush1.msra.mxu0 0.0
    %844 = vmatprep.subr.mxu0 0.0
    %845 = vmatpush1.msra.mxu0 0.0
    %846 = vmatprep.subr.mxu0 0.0
    %847 = vmatpush1.msra.mxu0 0.0
    %848 = vmatprep.subr.mxu0 0.0
    %849 = vmatpush1.msra.mxu0 0.0
    %850 = vmatprep.subr.mxu0 0.0
    %851 = vmatpush1.msra.mxu0 0.0
    %852 = vmatprep.subr.mxu0 0.0
    %853 = vmatpush1.msra.mxu0 %v55
    %854 = vmatprep.subr.mxu0 0.0
    %855 = vmatpush1.msra.mxu0 %v54
    %856 = vmatprep.subr.mxu0 0.0
    %857 = vmatpush1.msra.mxu0 %v53
    %858 = vmatprep.subr.mxu0 0.0
    %859 = vmatpush1.msra.mxu0 %v52
    %860 = vmatprep.subr.mxu0 0.0
    %861 = vmatpush2.msra.mxu0 0.0
    %862 = vmatprep.subr.mxu0 0.0
    %863 = vmatpush2.msra.mxu0 0.0
    %864 = vmatprep.subr.mxu0 0.0
    %865 = vmatpush2.msra.mxu0 0.0
    %866 = vmatprep.subr.mxu0 0.0
    %867 = vmatpush2.msra.mxu0 0.0
    %868 = vmatprep.subr.mxu0 0.0
    %869 = vmatpush2.msra.mxu0 0.0
    %870 = vmatprep.subr.mxu0 0.0
    %871 = vmatpush2.msra.mxu0 0.0
    %872 = vmatprep.subr.mxu0 0.0
    %873 = vmatpush2.msra.mxu0 0.0
    %874 = vmatprep.subr.mxu0 0.0
    %875 = vmatpush2.msra.mxu0 0.0
    %876 = vmatprep.subr.mxu0 0.0
    %877 = vmatpush2.msra.mxu0 0.0
    %878 = vmatprep.subr.mxu0 0.0
    %879 = vmatpush2.msra.mxu0 0.0
    %880 = vmatprep.subr.mxu0 0.0
    %881 = vmatpush2.msra.mxu0 0.0
    %882 = vmatprep.subr.mxu0 0.0
    %883 = vmatpush2.msra.mxu0 0.0
    %884 = vmatprep.subr.mxu0 0.0
    %885 = vmatpush2.msra.mxu0 0.0
    %886 = vmatprep.subr.mxu0 0.0
    %887 = vmatpush2.msra.mxu0 0.0
    %888 = vmatprep.subr.mxu0 0.0
    %889 = vmatpush2.msra.mxu0 0.0
    %890 = vmatprep.subr.mxu0 0.0
    %891 = vmatpush2.msra.mxu0 0.0
    %892 = vmatprep.mubr.f32.mxu0 0.0
    %893 = vmatmul.mubr.f32.gmra.mxu0 %v826
    %v894 = vpop.f32.mrf.mxu0
    %v895 = vadd.f32 %v824, %v894
    %v896 = vpop.f32.mrf.mxu0
    %897 = vdwg.mxu0
    %vm898 = vcmask 523264
    %899 = vst.msk [vmem:[#allocation7] sm:$0xff] %vm898, %v895
    %vm900 = vcmask 253952
    %901 = vst.msk [vmem:[#allocation8] sm:$0x1] %vm900, %v798
    // Predicated region
    $region10: #{tpu_custom_call.1} parent=1 // pred_check
      _
    $region11: #{tpu_custom_call.1} parent=1 // pred_check_branch
      %903 = sbr.rel (0) target = $region13
    $region12: #{tpu_custom_call.1} parent=1 // pred_region
      %s905 = ssub.s32 128, 128
      %906 = vsyncadd [#allocation6], %s905
      %s908 = sshll.u32 [#allocation7], 4
      %s909 = int_to_ptr.vmem [resolvable:$true] %s908
      %911 = dma.vmem_to_hbm [thread:$0]  %s909, 128, %s2, [#allocation6]
    $region13: #{tpu_custom_call.1} parent=1 // pred_fallthru
      _
    // Predicated region
    $region14: #{tpu_custom_call.1} parent=1 // pred_check
      _
    $region15: #{tpu_custom_call.1} parent=1 // pred_check_branch
      %913 = sbr.rel (0) target = $region17
    $region16: #{tpu_custom_call.1} parent=1 // pred_region
      %s915 = ssub.s32 16, 16
      %916 = vsyncadd [#allocation9], %s915
      %s918 = sshll.u32 [#allocation8], 4
      %s919 = int_to_ptr.vmem [resolvable:$true] %s918
      %921 = dma.vmem_to_hbm [thread:$0]  %s919, 16, %s3, [#allocation9]
    $region17: #{tpu_custom_call.1} parent=1 // pred_fallthru
      _
    // Predicated region
    $region18: #{tpu_custom_call.1} parent=1 // pred_check
      _
    $region19: #{tpu_custom_call.1} parent=1 // pred_check_branch
      %923 = sbr.rel (0) target = $region21
    $region20: #{tpu_custom_call.1} parent=1 // pred_region
      %924 = dma.done [#allocation6], 128
    $region21: #{tpu_custom_call.1} parent=1 // pred_fallthru
      _
    // Predicated region
    $region22: #{tpu_custom_call.1} parent=1 // pred_check
      _
    $region23: #{tpu_custom_call.1} parent=1 // pred_check_branch
      %926 = sbr.rel (0) target = $region25
    $region24: #{tpu_custom_call.1} parent=1 // pred_region
      %927 = dma.done [#allocation9], 16
    $region25: #{tpu_custom_call.1} parent=1 // pred_fallthru
      _
    %928 = vsyncpa [#allocation5], 1
    %929 = vsyncpa [#allocation6], 1
    %930 = vsyncpa [#allocation9], 1

</llo_original>
